<compile_context>
chip_gen: v6e
topology: v6e:2x2x1
jax: 0.10.0
libtpu: 0.0.40
codegen_flags: <defaults>
</compile_context>

<pallas_src>
import functools

import jax
import jax.numpy as jnp
from jax.experimental import pallas as pl
from jax.experimental.pallas import tpu as pltpu

_LANE = 128


def _sa_kernel(x_ref, w1_ref, b1_ref, w2_ref, b2_ref, o_ref, *, C, use_mxu):
    # x_ref/o_ref: (C, T)   channels on sublanes, spatial tile on lanes
    # w1_ref: (C, C) in x.dtype; b1_ref: (C, 1) f32; w2_ref: (C, 1) f32; b2_ref: (1, 1) f32
    T = x_ref.shape[-1]

    if use_mxu:
        # conv1x1 (C->C): h = W1 @ x, f32 accumulation on the MXU.
        h = jnp.dot(w1_ref[...], x_ref[...],
                    preferred_element_type=jnp.float32) + b1_ref[...]
    else:
        # Tiny C: a (C,C)@(C,T) matmul would use <2% of the MXU and pay its
        # latency for nothing; do C^2 VPU multiply-adds instead.
        w1 = w1_ref[...].astype(jnp.float32)
        h = jnp.broadcast_to(b1_ref[...], (C, T))
        for i in range(C):                       # static unroll, C is small
            h = h + w1[:, i:i + 1] * x_ref[i:i + 1, :].astype(jnp.float32)

    h = jnp.maximum(h, 0.0)                                       # ReLU

    # conv1x1 (C->1): VPU multiply + sublane (XLU) reduce over channels.
    s = jnp.sum(w2_ref[...] * h, axis=0, keepdims=True) + b2_ref[...]

    # sigmoid = 1 / (1 + exp(-s)); exp and reciprocal both on the EUP slot.
    y = pl.reciprocal(1.0 + jnp.exp(-s), approx=True)             # (1, T) f32

    # Broadcast-multiply the attention map over channels, in the input dtype.
    # Re-read x_ref here rather than holding the earlier load live.
    o_ref[...] = x_ref[...] * y.astype(o_ref.dtype)


def _vmem_capacity_bytes():
    try:
        return int(pltpu.get_tpu_info().vmem_capacity_bytes)
    except Exception:
        return 64 * 2 ** 20            # conservative (v7x-sized) fallback


def _pick_hw_tile(hw, C, itemsize, n_images, vmem_capacity):
    """Lane-aligned spatial tile sized against a per-generation VMEM budget,
    capped so the grid keeps enough steps for pipelining / megacore."""
    small_vmem = vmem_capacity <= 64 * 2 ** 20         # v7x: 64 MiB per TC
    budget = (36 if small_vmem else 80) * 2 ** 20
    # Bytes per lane-column per grid step:
    #   2x double-buffered input block + 2x output block (x.dtype)
    #   + ~2 (C, T)-sized f32 intermediates (h / ReLU headroom).
    bytes_per_col = 4 * C * itemsize + 8 * C
    t = max(_LANE, (budget // bytes_per_col) // _LANE * _LANE)

    # Keep >= min_steps total grid steps: pipeline depth everywhere, and on
    # v7x the ("parallel","parallel") grid is split across 2 TensorCores.
    min_steps = 8 if small_vmem else 4
    tiles_per_image = max(1, -(-min_steps // n_images))           # ceil
    t_cap = -(-hw // tiles_per_image)                             # ceil
    t_cap = -(-t_cap // _LANE) * _LANE                            # round up to lanes
    t = min(t, t_cap)

    if t >= hw:
        return hw                      # full-extent block (always legal)
    return t                           # multiple of 128; last block may be partial


def sa_layer(x_nchw, w1, b1, w2, b2):
    """x: (N, C, H, W). w1: (C, C, 1, 1), b1: (C,), w2: (1, C, 1, 1), b2: (1,)."""
    N, C, H, W = x_nchw.shape
    HW = H * W

    # NCHW -> (N, C, HW): pure reshape, no transpose / extra HBM pass.
    x = x_nchw.reshape(N, C, HW)

    # conv weights (C_out, C_in, 1, 1) -> matmul layout; w1 in x.dtype so a
    # bf16 x gets a native bf16 MXU pass; biases / w2 stay f32 (accumulation).
    w1m = w1.reshape(C, C).astype(x_nchw.dtype)
    b1m = b1.reshape(C, 1).astype(jnp.float32)
    w2m = w2.reshape(C, 1).astype(jnp.float32)
    b2m = b2.reshape(1, 1).astype(jnp.float32)

    vmem_cap = _vmem_capacity_bytes()
    itemsize = jnp.dtype(x_nchw.dtype).itemsize
    T = _pick_hw_tile(HW, C, itemsize, N, vmem_cap)
    grid = (N, pl.cdiv(HW, T))

    # MXU only pays off with enough channel rows to feed it.
    use_mxu = C >= (16 if itemsize < 4 else 8)
    kernel = functools.partial(_sa_kernel, C=C, use_mxu=use_mxu)

    # Raise scoped VMEM to match the tile budget (defaults are 16/32 MiB).
    vmem_limit = (48 if vmem_cap <= 64 * 2 ** 20 else 96) * 2 ** 20

    out = pl.pallas_call(
        kernel,
        out_shape=jax.ShapeDtypeStruct((N, C, HW), x_nchw.dtype),
        grid_spec=pltpu.PrefetchScalarGridSpec(
            num_scalar_prefetch=0,
            grid=grid,
            in_specs=[
                pl.BlockSpec((pl.Squeezed(), C, T), lambda b, t: (b, 0, t)),  # x tile
                pl.BlockSpec((C, C), lambda b, t: (0, 0)),                    # w1 (resident)
                pl.BlockSpec((C, 1), lambda b, t: (0, 0)),                    # b1
                pl.BlockSpec((C, 1), lambda b, t: (0, 0)),                    # w2
                pl.BlockSpec((1, 1), lambda b, t: (0, 0)),                    # b2
            ],
            out_specs=pl.BlockSpec((pl.Squeezed(), C, T), lambda b, t: (b, 0, t)),
        ),
        compiler_params=pltpu.CompilerParams(
            # Both axes are independent per-pixel work; "parallel" lets v7x's
            # two TensorCores split the (N x spatial-tiles) grid.
            dimension_semantics=("parallel", "parallel"),
            vmem_limit_bytes=vmem_limit,
        ),
    )(x, w1m, b1m, w2m, b2m)

    # (N, C, HW) -> NCHW: pure reshape.
    return out.reshape(N, C, H, W)


def _reference(x_nchw, w1, b1, w2, b2):
    """Pure-JAX reference of SALayer.forward (1x1 convs as einsums)."""
    N, C, H, W = x_nchw.shape
    h = jnp.einsum("oi,nihw->nohw", w1.reshape(C, C), x_nchw) + b1[None, :, None, None]
    h = jnp.maximum(h, 0.0)
    s = jnp.einsum("oi,nihw->nohw", w2.reshape(1, C), h) + b2[None, :, None, None]
    y = jax.nn.sigmoid(s)  # (N,1,H,W)
    return x_nchw * y


if __name__ == "__main__":
    key = jax.random.PRNGKey(0)
    kx, k1, k2, k3, k4 = jax.random.split(key, 5)

    N, C, H, W = 2, 4, 16, 16
    x = jax.random.normal(kx, (N, C, H, W), dtype=jnp.float32)

    # Deterministic parameter init (shapes per nn.Conv2d(channel, channel, 1) etc.)
    w1 = jax.random.normal(k1, (C, C, 1, 1), dtype=jnp.float32) * 0.2
    b1 = jax.random.normal(k2, (C,), dtype=jnp.float32) * 0.1
    w2 = jax.random.normal(k3, (1, C, 1, 1), dtype=jnp.float32) * 0.2
    b2 = jax.random.normal(k4, (1,), dtype=jnp.float32) * 0.1

    out = sa_layer(x, w1, b1, w2, b2)
    out = jax.block_until_ready(out)

    ref = _reference(x, w1, b1, w2, b2)
    assert out.shape == (N, C, H, W)
    # Tolerance loosened slightly vs exact math: sigmoid uses the EUP's
    # approximate reciprocal (pl.reciprocal(approx=True)).
    assert jnp.allclose(out, ref, atol=2e-3, rtol=2e-3), "mismatch vs reference"

    print("KERNEL_OK")
</pallas_src>

<mosaic_0001>
module attributes {stable_mosaic.version = 11 : i64} {
  func.func @_sa_kernel(%arg0: i32, %arg1: i32, %arg2: memref<1x4x128xf32, #tpu.memory_space<vmem>>, %arg3: memref<4x4xf32, #tpu.memory_space<vmem>>, %arg4: memref<4x1xf32, #tpu.memory_space<vmem>>, %arg5: memref<4x1xf32, #tpu.memory_space<vmem>>, %arg6: memref<1x1xf32, #tpu.memory_space<vmem>>, %arg7: memref<1x4x128xf32, #tpu.memory_space<vmem>>) attributes {dimension_semantics = [#tpu.dimension_semantics<parallel>, #tpu.dimension_semantics<parallel>], iteration_bounds = array<i64: 2, 2>, scalar_prefetch = 0 : i64, scratch_operands = 0 : i64, tpu.core_type = #tpu.core_type<tc>, window_params = [{transform_indices = @transform_0, window_bounds = array<i64: 1, 4, 128>}, {pipeline_mode = #tpu.pipeline_mode<synchronous>, transform_indices = @transform_1, window_bounds = array<i64: 4, 4>}, {pipeline_mode = #tpu.pipeline_mode<synchronous>, transform_indices = @transform_2, window_bounds = array<i64: 4, 1>}, {pipeline_mode = #tpu.pipeline_mode<synchronous>, transform_indices = @transform_3, window_bounds = array<i64: 4, 1>}, {pipeline_mode = #tpu.pipeline_mode<synchronous>, transform_indices = @transform_4, window_bounds = array<i64: 1, 1>}, {transform_indices = @transform_5, window_bounds = array<i64: 1, 4, 128>}]} {
    %c0 = arith.constant 0 : index
    %c0_0 = arith.constant 0 : index
    %0 = vector.load %arg3[%c0, %c0_0] : memref<4x4xf32, #tpu.memory_space<vmem>>, vector<4x4xf32>
    %c0_1 = arith.constant 0 : index
    %c0_2 = arith.constant 0 : index
    %1 = vector.load %arg4[%c0_1, %c0_2] : memref<4x1xf32, #tpu.memory_space<vmem>>, vector<4x1xf32>
    %2 = vector.shape_cast %1 : vector<4x1xf32> to vector<4x1xf32>
    %3 = vector.broadcast %2 : vector<4x1xf32> to vector<4x128xf32>
    %4 = vector.extract_strided_slice %0 {offsets = [0, 0], sizes = [4, 1], strides = [1, 1]} : vector<4x4xf32> to vector<4x1xf32>
    %c0_3 = arith.constant 0 : index
    %c0_4 = arith.constant 0 : index
    %c0_5 = arith.constant 0 : index
    %5 = vector.load %arg2[%c0_3, %c0_4, %c0_5] : memref<1x4x128xf32, #tpu.memory_space<vmem>>, vector<1x1x128xf32>
    %6 = vector.shape_cast %5 : vector<1x1x128xf32> to vector<1x128xf32>
    %7 = vector.broadcast %4 : vector<4x1xf32> to vector<4x128xf32>
    %8 = vector.broadcast %6 : vector<1x128xf32> to vector<4x128xf32>
    %9 = arith.mulf %7, %8 : vector<4x128xf32>
    %10 = arith.addf %3, %9 : vector<4x128xf32>
    %11 = vector.extract_strided_slice %0 {offsets = [0, 1], sizes = [4, 1], strides = [1, 1]} : vector<4x4xf32> to vector<4x1xf32>
    %c0_6 = arith.constant 0 : index
    %c1 = arith.constant 1 : index
    %c0_7 = arith.constant 0 : index
    %12 = vector.load %arg2[%c0_6, %c1, %c0_7] : memref<1x4x128xf32, #tpu.memory_space<vmem>>, vector<1x1x128xf32>
    %13 = vector.shape_cast %12 : vector<1x1x128xf32> to vector<1x128xf32>
    %14 = vector.broadcast %11 : vector<4x1xf32> to vector<4x128xf32>
    %15 = vector.broadcast %13 : vector<1x128xf32> to vector<4x128xf32>
    %16 = arith.mulf %14, %15 : vector<4x128xf32>
    %17 = arith.addf %10, %16 : vector<4x128xf32>
    %18 = vector.extract_strided_slice %0 {offsets = [0, 2], sizes = [4, 1], strides = [1, 1]} : vector<4x4xf32> to vector<4x1xf32>
    %c0_8 = arith.constant 0 : index
    %c2 = arith.constant 2 : index
    %c0_9 = arith.constant 0 : index
    %19 = vector.load %arg2[%c0_8, %c2, %c0_9] : memref<1x4x128xf32, #tpu.memory_space<vmem>>, vector<1x1x128xf32>
    %20 = vector.shape_cast %19 : vector<1x1x128xf32> to vector<1x128xf32>
    %21 = vector.broadcast %18 : vector<4x1xf32> to vector<4x128xf32>
    %22 = vector.broadcast %20 : vector<1x128xf32> to vector<4x128xf32>
    %23 = arith.mulf %21, %22 : vector<4x128xf32>
    %24 = arith.addf %17, %23 : vector<4x128xf32>
    %25 = vector.extract_strided_slice %0 {offsets = [0, 3], sizes = [4, 1], strides = [1, 1]} : vector<4x4xf32> to vector<4x1xf32>
    %c0_10 = arith.constant 0 : index
    %c3 = arith.constant 3 : index
    %c0_11 = arith.constant 0 : index
    %26 = vector.load %arg2[%c0_10, %c3, %c0_11] : memref<1x4x128xf32, #tpu.memory_space<vmem>>, vector<1x1x128xf32>
    %27 = vector.shape_cast %26 : vector<1x1x128xf32> to vector<1x128xf32>
    %28 = vector.broadcast %25 : vector<4x1xf32> to vector<4x128xf32>
    %29 = vector.broadcast %27 : vector<1x128xf32> to vector<4x128xf32>
    %30 = arith.mulf %28, %29 : vector<4x128xf32>
    %31 = arith.addf %24, %30 : vector<4x128xf32>
    %cst = arith.constant 0.000000e+00 : f32
    %32 = vector.broadcast %cst : f32 to vector<4x128xf32>
    %33 = arith.maximumf %31, %32 : vector<4x128xf32>
    %c0_12 = arith.constant 0 : index
    %c0_13 = arith.constant 0 : index
    %34 = vector.load %arg5[%c0_12, %c0_13] : memref<4x1xf32, #tpu.memory_space<vmem>>, vector<4x1xf32>
    %35 = vector.broadcast %34 : vector<4x1xf32> to vector<4x128xf32>
    %36 = arith.mulf %35, %33 : vector<4x128xf32>
    %cst_14 = arith.constant dense<0.000000e+00> : vector<128xf32>
    %37 = vector.multi_reduction <add>, %36, %cst_14 [0] : vector<4x128xf32> to vector<128xf32>
    %38 = vector.shape_cast %37 : vector<128xf32> to vector<1x128xf32>
    %c0_15 = arith.constant 0 : index
    %c0_16 = arith.constant 0 : index
    %39 = vector.load %arg6[%c0_15, %c0_16] : memref<1x1xf32, #tpu.memory_space<vmem>>, vector<1x1xf32>
    %40 = vector.broadcast %39 : vector<1x1xf32> to vector<1x128xf32>
    %41 = arith.addf %38, %40 : vector<1x128xf32>
    %cst_17 = arith.constant 0.000000e+00 : f32
    %42 = vector.broadcast %cst_17 : f32 to vector<1x128xf32>
    %43 = arith.subf %42, %41 : vector<1x128xf32>
    %44 = math.exp %43 : vector<1x128xf32>
    %cst_18 = arith.constant 1.000000e+00 : f32
    %45 = vector.broadcast %cst_18 : f32 to vector<1x128xf32>
    %46 = arith.addf %45, %44 : vector<1x128xf32>
    %47 = tpu.reciprocal %46 {approx = true} : vector<1x128xf32> -> vector<1x128xf32>
    %c0_19 = arith.constant 0 : index
    %c0_20 = arith.constant 0 : index
    %c0_21 = arith.constant 0 : index
    %48 = vector.load %arg2[%c0_19, %c0_20, %c0_21] : memref<1x4x128xf32, #tpu.memory_space<vmem>>, vector<1x4x128xf32>
    %49 = vector.shape_cast %48 : vector<1x4x128xf32> to vector<4x128xf32>
    %50 = vector.broadcast %47 : vector<1x128xf32> to vector<4x128xf32>
    %51 = arith.mulf %49, %50 : vector<4x128xf32>
    %c0_22 = arith.constant 0 : index
    %c0_23 = arith.constant 0 : index
    %c0_24 = arith.constant 0 : index
    %52 = vector.load %arg7[%c0_22, %c0_23, %c0_24] : memref<1x4x128xf32, #tpu.memory_space<vmem>>, vector<1x4x128xf32>
    %53 = vector.shape_cast %52 : vector<1x4x128xf32> to vector<4x128xf32>
    %54 = vector.shape_cast %51 : vector<4x128xf32> to vector<1x4x128xf32>
    tpu.vector_store %arg7[%c0_22, %c0_23, %c0_24], %54 {strides = array<i32>} : memref<1x4x128xf32, #tpu.memory_space<vmem>>, vector<1x4x128xf32>,
    return
  }
  func.func @transform_0(%arg0: i32, %arg1: i32) -> (i32, i32, i32) {
    %c0_i32 = arith.constant 0 : i32
    %c0_i32_0 = arith.constant 0 : i32
    return %arg0, %c0_i32, %arg1 : i32, i32, i32
  }
  func.func @transform_1(%arg0: i32, %arg1: i32) -> (i32, i32) {
    %c0_i32 = arith.constant 0 : i32
    %c0_i32_0 = arith.constant 0 : i32
    %c0_i32_1 = arith.constant 0 : i32
    return %c0_i32, %c0_i32_0 : i32, i32
  }
  func.func @transform_2(%arg0: i32, %arg1: i32) -> (i32, i32) {
    %c0_i32 = arith.constant 0 : i32
    %c0_i32_0 = arith.constant 0 : i32
    %c0_i32_1 = arith.constant 0 : i32
    return %c0_i32, %c0_i32_0 : i32, i32
  }
  func.func @transform_3(%arg0: i32, %arg1: i32) -> (i32, i32) {
    %c0_i32 = arith.constant 0 : i32
    %c0_i32_0 = arith.constant 0 : i32
    %c0_i32_1 = arith.constant 0 : i32
    return %c0_i32, %c0_i32_0 : i32, i32
  }
  func.func @transform_4(%arg0: i32, %arg1: i32) -> (i32, i32) {
    %c0_i32 = arith.constant 0 : i32
    %c0_i32_0 = arith.constant 0 : i32
    %c0_i32_1 = arith.constant 0 : i32
    return %c0_i32, %c0_i32_0 : i32, i32
  }
  func.func @transform_5(%arg0: i32, %arg1: i32) -> (i32, i32, i32) {
    %c0_i32 = arith.constant 0 : i32
    %c0_i32_0 = arith.constant 0 : i32
    return %arg0, %c0_i32, %arg1 : i32, i32, i32
  }
}

</mosaic_0001>

<llo_original>
// kernel: tpu_custom_call.1
$region0: #{tpu_custom_call.1}
  #allocation0 [shape = 'u32[]', space=smem, size = 0x4, offset = 0x4, fixed_abs, tag = 'smem constant byte address 0x4 - core index']
  #allocation1 [shape = 'u32[144,128]{1,0:T(1,128)}', space=vmem, size = 0x12000, scoped, tag = 'internal scratch']
  #allocation2 [shape = 'f32[1,1]{1,0:T(1,128)S(1)}', space=vmem, size = 0x200, scoped, tag = 'scoped memory for tpu_custom_call.1']
  %s0 = inlined_call_operand.hbm [shape: f32[2,4,256], index: 0, kind: input, shape index: {}]
  %s1 = inlined_call_operand.vmem [shape: f32[4,4], index: 1, kind: input, shape index: {}]
  %s2 = inlined_call_operand.vmem [shape: f32[4,1], index: 2, kind: input, shape index: {}]
  %s3 = inlined_call_operand.vmem [shape: f32[4,1], index: 3, kind: input, shape index: {}]
  %s4 = inlined_call_operand.<no memory space> [shape: f32[1,1], index: 4, kind: input, shape index: {}]
  %s5 = inlined_call_operand.hbm [shape: f32[2,4,256], index: 5, kind: output, shape index: {}]
  %s6 = sld [smem:[#allocation0]]
  $region57: #{tpu_custom_call.1} parent=0
    _
  %s8 = ssub.s32 1, %s6
  %s9 = scalar_select 0, %s8, %s6
  %v10 = vstv %s4
  %11 = vst [vmem:[#allocation2] sm:$0x1] %v10
  $region1: #{tpu_custom_call.1} parent=0
    #allocation3 [shape = 'u8[4096]{0}', space=vmem, size = 0x1000, scoped, tag = 'input window, operand 0']
    #allocation4 [shape = 's32[2]{0}', space=sflag, size = 0x8, scoped, tag = 'scoped memory for tpu_custom_call.1']
    #allocation5 [shape = 's32[2]{0}', space=sflag, size = 0x8, scoped, tag = 'scoped memory for tpu_custom_call.1']
    #allocation6 [shape = 'u8[4096]{0}', space=vmem, size = 0x1000, scoped, tag = 'output window, operand 0']
    %12 = vsyncpa [#allocation4], 0
    %s13 = scalar_lea.sflag [#allocation4], 1
    %14 = vsyncpa %s13, 0
    %15 = vsyncpa [#allocation5], 0
    %s16 = scalar_lea.sflag [#allocation5], 1
    %17 = vsyncpa %s16, 0
    loop: start=0, step=1, limit=6
    $region2: #{tpu_custom_call.1} parent=1 // loop_pre_header
      _
    $region3: #{tpu_custom_call.1} parent=1 // loop_header
      %s19 = sphi 0, %s23
      %p20 = scmp.ge.s32.totalorder %s19, 6
      %s26 = sphi 0, %s38
      %s27 = sphi 0, %s34
      %s28 = sphi 0, %s26
      %s29 = sphi 0, %s27
      %s30 = sphi 0, %s28
      %s31 = sphi 0, %s29
      %s43 = sphi 0, %s45
      %s46 = sphi 0, %s43
      %s47 = sphi 0, %s46
      %s63 = sphi 0, %s47
      %s67 = sphi 0, %s67
      %s69 = sphi 0, %s67
      %s70 = sphi 0, %s69
      %s84 = sphi 0, %s70
      %s88 = sphi 0, %s88
      %s90 = sphi 0, %s88
      %s91 = sphi 0, %s90
      %s105 = sphi 0, %s91
      %s109 = sphi 0, %s109
      %s111 = sphi 0, %s109
      %s112 = sphi 0, %s111
      %s126 = sphi 0, %s112
      %s130 = sphi 0, %s130
      %s132 = sphi 0, %s130
      %s133 = sphi 0, %s132
      %s147 = sphi 0, %s133
      %s155 = sphi 0, %s157
      %s158 = sphi 0, %s155
      %s159 = sphi 0, %s158
      %s175 = sphi 0, %s159
    $region4: #{tpu_custom_call.1} parent=1 // loop_header_branch
      %22 = sbr.rel (%p20) target = $region8
    $region5: #{tpu_custom_call.1} parent=1 // loop_body
      %s24 = ssub.s32 %s19, 1
      %s25 = ssub.s32 %s19, 2
      %s32 = sadd.s32 1, %s27
      %p33 = scmp.ge.s32.totalorder %s32, 2
      %s34 = scalar_select %p33, 0, %s32
      %s35 = sadd.s32 1, %s26
      %s36 = scalar_select %p33, %s35, %s26
      %p37 = scmp.ge.s32.totalorder %s36, 2
      %s38 = scalar_select %p37, 0, %s36
      %s39 = ssub.s32 %s26, %s38
      %s40 = ssub.s32 %s27, %s34
      %s41 = sor.u32 %s39, %s40
      %p42 = scmp.eq.s32.totalorder %s41, 0
      %s44 = sadd.s32 %s43, 1
      %s45 = scalar_select %p42, %s43, %s44
      %p48 = pneg %p42
      %p49 = scmp.eq.s32.totalorder %s19, 3
      %p50 = por %p48, %p49
      %p51 = scmp.ne.s32.totalorder %s43, %s46
      %p52 = scmp.eq.s32.totalorder %s19, 0
      %p53 = por %p51, %p52
      %p54 = scmp.ne.s32.totalorder %s43, %s46
      %p55 = scmp.eq.s32.totalorder %s24, 3
      %p56 = por %p54, %p55
      %p57 = scmp.ne.s32.totalorder %s46, %s47
      %p58 = scmp.eq.s32.totalorder %s24, 0
      %p59 = por %p57, %p58
      %p60 = scmp.ne.s32.totalorder %s46, %s47
      %p61 = scmp.eq.s32.totalorder %s25, 3
      %p62 = por %p60, %p61
      %p64 = scmp.ne.s32.totalorder %s47, %s63
      %p65 = scmp.eq.s32.totalorder %s25, 0
      %p66 = por %p64, %p65
      %s68 = sadd.s32 %s67, 1
      %p71 = scmp.eq.s32.totalorder %s19, 3
      %p72 = scmp.ne.s32.totalorder %s67, %s69
      %p73 = scmp.eq.s32.totalorder %s19, 0
      %p74 = por %p72, %p73
      %p75 = scmp.ne.s32.totalorder %s67, %s69
      %p76 = scmp.eq.s32.totalorder %s24, 3
      %p77 = por %p75, %p76
      %p78 = scmp.ne.s32.totalorder %s69, %s70
      %p79 = scmp.eq.s32.totalorder %s24, 0
      %p80 = por %p78, %p79
      %p81 = scmp.ne.s32.totalorder %s69, %s70
      %p82 = scmp.eq.s32.totalorder %s25, 3
      %p83 = por %p81, %p82
      %p85 = scmp.ne.s32.totalorder %s70, %s84
      %p86 = scmp.eq.s32.totalorder %s25, 0
      %p87 = por %p85, %p86
      %s89 = sadd.s32 %s88, 1
      %p92 = scmp.eq.s32.totalorder %s19, 3
      %p93 = scmp.ne.s32.totalorder %s88, %s90
      %p94 = scmp.eq.s32.totalorder %s19, 0
      %p95 = por %p93, %p94
      %p96 = scmp.ne.s32.totalorder %s88, %s90
      %p97 = scmp.eq.s32.totalorder %s24, 3
      %p98 = por %p96, %p97
      %p99 = scmp.ne.s32.totalorder %s90, %s91
      %p100 = scmp.eq.s32.totalorder %s24, 0
      %p101 = por %p99, %p100
      %p102 = scmp.ne.s32.totalorder %s90, %s91
      %p103 = scmp.eq.s32.totalorder %s25, 3
      %p104 = por %p102, %p103
      %p106 = scmp.ne.s32.totalorder %s91, %s105
      %p107 = scmp.eq.s32.totalorder %s25, 0
      %p108 = por %p106, %p107
      %s110 = sadd.s32 %s109, 1
      %p113 = scmp.eq.s32.totalorder %s19, 3
      %p114 = scmp.ne.s32.totalorder %s109, %s111
      %p115 = scmp.eq.s32.totalorder %s19, 0
      %p116 = por %p114, %p115
      %p117 = scmp.ne.s32.totalorder %s109, %s111
      %p118 = scmp.eq.s32.totalorder %s24, 3
      %p119 = por %p117, %p118
      %p120 = scmp.ne.s32.totalorder %s111, %s112
      %p121 = scmp.eq.s32.totalorder %s24, 0
      %p122 = por %p120, %p121
      %p123 = scmp.ne.s32.totalorder %s111, %s112
      %p124 = scmp.eq.s32.totalorder %s25, 3
      %p125 = por %p123, %p124
      %p127 = scmp.ne.s32.totalorder %s112, %s126
      %p128 = scmp.eq.s32.totalorder %s25, 0
      %p129 = por %p127, %p128
      %s131 = sadd.s32 %s130, 1
      %p134 = scmp.eq.s32.totalorder %s19, 3
      %p135 = scmp.ne.s32.totalorder %s130, %s132
      %p136 = scmp.eq.s32.totalorder %s19, 0
      %p137 = por %p135, %p136
      %p138 = scmp.ne.s32.totalorder %s130, %s132
      %p139 = scmp.eq.s32.totalorder %s24, 3
      %p140 = por %p138, %p139
      %p141 = scmp.ne.s32.totalorder %s132, %s133
      %p142 = scmp.eq.s32.totalorder %s24, 0
      %p143 = por %p141, %p142
      %p144 = scmp.ne.s32.totalorder %s132, %s133
      %p145 = scmp.eq.s32.totalorder %s25, 3
      %p146 = por %p144, %p145
      %p148 = scmp.ne.s32.totalorder %s133, %s147
      %p149 = scmp.eq.s32.totalorder %s25, 0
      %p150 = por %p148, %p149
      %s151 = ssub.s32 %s26, %s38
      %s152 = ssub.s32 %s27, %s34
      %s153 = sor.u32 %s151, %s152
      %p154 = scmp.eq.s32.totalorder %s153, 0
      %s156 = sadd.s32 %s155, 1
      %s157 = scalar_select %p154, %s155, %s156
      %p160 = pneg %p154
      %p161 = scmp.eq.s32.totalorder %s19, 3
      %p162 = por %p160, %p161
      %p163 = scmp.ne.s32.totalorder %s155, %s158
      %p164 = scmp.eq.s32.totalorder %s19, 0
      %p165 = por %p163, %p164
      %p166 = scmp.ne.s32.totalorder %s155, %s158
      %p167 = scmp.eq.s32.totalorder %s24, 3
      %p168 = por %p166, %p167
      %p169 = scmp.ne.s32.totalorder %s158, %s159
      %p170 = scmp.eq.s32.totalorder %s24, 0
      %p171 = por %p169, %p170
      %p172 = scmp.ne.s32.totalorder %s158, %s159
      %p173 = scmp.eq.s32.totalorder %s25, 3
      %p174 = por %p172, %p173
      %p176 = scmp.ne.s32.totalorder %s159, %s175
      %p177 = scmp.eq.s32.totalorder %s25, 0
      %p178 = por %p176, %p177
      %p179 = scmp.le.s32.totalorder 1, %s19
      %p180 = scmp.lt.s32.totalorder %s19, 5
      %p181 = pnand %p179, %p180
      %p182 = pneg %p181
      // Predicated region
      $region9: #{tpu_custom_call.1} parent=5 // pred_check
        _
      $region10: #{tpu_custom_call.1} parent=5 // pred_check_branch
        %184 = sbr.rel (%p181) target = $region12
      $region11: #{tpu_custom_call.1} parent=5 // pred_region
        %s185 = ssub.s32 %s19, 1
        // Predicated region
        $region13: #{tpu_custom_call.1} parent=11 // pred_check
          %p186 = pneg %p80
        $region14: #{tpu_custom_call.1} parent=11 // pred_check_branch
          %188 = sbr.rel (%p186) target = $region16
        $region15: #{tpu_custom_call.1} parent=11 // pred_region
          _
        $region16: #{tpu_custom_call.1} parent=11 // pred_fallthru
          _
        // Predicated region
        $region17: #{tpu_custom_call.1} parent=11 // pred_check
          %p189 = pneg %p101
        $region18: #{tpu_custom_call.1} parent=11 // pred_check_branch
          %191 = sbr.rel (%p189) target = $region20
        $region19: #{tpu_custom_call.1} parent=11 // pred_region
          _
        $region20: #{tpu_custom_call.1} parent=11 // pred_fallthru
          _
        // Predicated region
        $region21: #{tpu_custom_call.1} parent=11 // pred_check
          %p192 = pneg %p122
        $region22: #{tpu_custom_call.1} parent=11 // pred_check_branch
          %194 = sbr.rel (%p192) target = $region24
        $region23: #{tpu_custom_call.1} parent=11 // pred_region
          _
        $region24: #{tpu_custom_call.1} parent=11 // pred_fallthru
          _
        // Predicated region
        $region25: #{tpu_custom_call.1} parent=11 // pred_check
          %p195 = pneg %p143
        $region26: #{tpu_custom_call.1} parent=11 // pred_check_branch
          %197 = sbr.rel (%p195) target = $region28
        $region27: #{tpu_custom_call.1} parent=11 // pred_region
          _
        $region28: #{tpu_custom_call.1} parent=11 // pred_fallthru
          _
      $region12: #{tpu_custom_call.1} parent=5 // pred_fallthru
        _
      %p198 = scmp.lt.s32.totalorder %s19, 4
      // Predicated region
      $region29: #{tpu_custom_call.1} parent=5 // pred_check
        %p199 = pneg %p198
      $region30: #{tpu_custom_call.1} parent=5 // pred_check_branch
        %201 = sbr.rel (%p199) target = $region32
      $region31: #{tpu_custom_call.1} parent=5 // pred_region
        // Predicated region
        $region33: #{tpu_custom_call.1} parent=31 // pred_check
          %p202 = pneg %p53
        $region34: #{tpu_custom_call.1} parent=31 // pred_check_branch
          %204 = sbr.rel (%p202) target = $region36
        $region35: #{tpu_custom_call.1} parent=31 // pred_region
          %s205 = sand.u32 %s43, 1
          %s206 = scalar_lea.sflag [#allocation4], %s205
          %s207 = sand.u32 %s43, 1
          %s208 = smul.addr %s207, 4
          %s209 = scalar_lea.vmem [#allocation3], %s208
          %s211 = ssub.s32 64, 64
          %212 = vsyncadd %s206, %s211
          %s213 = smul.addr %s26, 2
          %s214 = sadd.s32 %s27, %s213
          %s215 = smul.addr %s214, 64
          %s216 = scalar_lea.hbm %s0, %s215
          %s218 = sshll.u32 %s209, 4
          %s219 = int_to_ptr.vmem [resolvable:$true] %s218
          %221 = dma.hbm_to_vmem [thread:$0]  %s216, 64, %s219, %s206
        $region36: #{tpu_custom_call.1} parent=31 // pred_fallthru
          _
      $region32: #{tpu_custom_call.1} parent=5 // pred_fallthru
        _
      %p222 = scmp.le.s32.totalorder 1, %s19
      %p223 = scmp.lt.s32.totalorder %s19, 5
      %p224 = pnand %p222, %p223
      %p225 = pneg %p224
      // Predicated region
      $region37: #{tpu_custom_call.1} parent=5 // pred_check
        _
      $region38: #{tpu_custom_call.1} parent=5 // pred_check_branch
        %227 = sbr.rel (%p224) target = $region40
      $region39: #{tpu_custom_call.1} parent=5 // pred_region
        %s228 = ssub.s32 %s19, 1
        %s229 = sand.u32 %s46, 1
        %s230 = scalar_lea.sflag [#allocation4], %s229
        %s231 = sand.u32 %s46, 1
        %s232 = smul.addr %s231, 4
        %s233 = scalar_lea.vmem [#allocation3], %s232
        // Predicated region
        $region41: #{tpu_custom_call.1} parent=39 // pred_check
          %p234 = pneg %p59
        $region42: #{tpu_custom_call.1} parent=39 // pred_check_branch
          %236 = sbr.rel (%p234) target = $region44
        $region43: #{tpu_custom_call.1} parent=39 // pred_region
          %237 = dma.done %s230, 64
        $region44: #{tpu_custom_call.1} parent=39 // pred_fallthru
          _
        %s238 = sand.u32 %s46, 1
        %s239 = scalar_lea.sflag [#allocation4], %s238
        %s240 = sand.u32 %s46, 1
        %s241 = smul.addr %s240, 4
        %s242 = scalar_lea.vmem [#allocation3], %s241
        %p243 = pneg %p59
        %p244 = pneg %p56
        %p245 = pneg %p80
        %p246 = pneg %p77
        %p247 = pneg %p101
        %p248 = pneg %p98
        %p249 = pneg %p122
        %p250 = pneg %p119
        %p251 = pneg %p143
        %p252 = pneg %p140
        %p253 = pneg %p171
        %p254 = pneg %p168
        %s255 = sand.u32 %s158, 1
        %s256 = scalar_lea.sflag [#allocation5], %s255
        %s257 = sand.u32 %s158, 1
        %s258 = smul.addr %s257, 4
        %s259 = scalar_lea.vmem [#allocation6], %s258
        %v260 = vld [vmem:[%s1] sm:$0xf]
        %v261 = vld [vmem:[%s2] sm:$0xf]
        %263 = vset.pattern.permute.xlu0 0
        %264 = vperm.xlu0 %263, %v261
        %v265 = vpop.permute.xlu0 %264
        %v267 = vld [vmem:[%s233] sm:$0x1]
        %269 = vset.pattern.permute.xlu0 0
        %270 = vperm.xlu0 %269, %v260
        %v271 = vpop.permute.xlu0 %270
        %v273 = vlaneseq
        %v274 = vshrl.u32 %v273, 7
        %v275 = vsub.s32 0, %v274
        %v276 = vrot.slane %v267, %v275
        %v277 = vmul.f32 %v271, %v276
        %v278 = vadd.f32 %v265, %v277
        %v279 = vld [vmem:[%s233 + $0x1] sm:$0x1]
        %280 = vset.pattern.permute.xlu0 1
        %281 = vperm.xlu0 %280, %v260
        %v282 = vpop.permute.xlu0 %281
        %v284 = vlaneseq
        %v285 = vshrl.u32 %v284, 7
        %v286 = vsub.s32 0, %v285
        %v287 = vrot.slane %v279, %v286
        %v288 = vmul.f32 %v282, %v287
        %v289 = vadd.f32 %v278, %v288
        %v290 = vld [vmem:[%s233 + $0x2] sm:$0x1]
        %291 = vset.pattern.permute.xlu0 2
        %292 = vperm.xlu0 %291, %v260
        %v293 = vpop.permute.xlu0 %292
        %v295 = vlaneseq
        %v296 = vshrl.u32 %v295, 7
        %v297 = vsub.s32 0, %v296
        %v298 = vrot.slane %v290, %v297
        %v299 = vmul.f32 %v293, %v298
        %v300 = vadd.f32 %v289, %v299
        %v301 = vld [vmem:[%s233 + $0x3] sm:$0x1]
        %302 = vset.pattern.permute.xlu0 3
        %303 = vperm.xlu0 %302, %v260
        %v304 = vpop.permute.xlu0 %303
        %v306 = vlaneseq
        %v307 = vshrl.u32 %v306, 7
        %v308 = vsub.s32 0, %v307
        %v309 = vrot.slane %v301, %v308
        %v310 = vmul.f32 %v304, %v309
        %v311 = vadd.f32 %v300, %v310
        %v312 = vmax.f32 %v311, 0.0
        %v313 = vld [vmem:[%s3] sm:$0xf]
        %315 = vset.pattern.permute.xlu0 0
        %316 = vperm.xlu0 %315, %v313
        %v317 = vpop.permute.xlu0 %316
        %v319 = vmul.f32 %v317, %v312
        %vm320 = vcmask 1043456
        %v321 = vsel %vm320, %v319, 0.0
        %v322 = vrot.slane %v321, 4
        %v323 = vadd.f32 %v321, %v322
        %v324 = vrot.slane %v323, 2
        %v325 = vadd.f32 %v323, %v324
        %v326 = vrot.slane %v325, 1
        %v327 = vadd.f32 %v325, %v326
        %v328 = vld [vmem:[#allocation2] sm:$0x1]
        %330 = vset.pattern.permute.xlu0 0
        %331 = vperm.xlu0 %330, %v328
        %v332 = vpop.permute.xlu0 %331
        %v334 = vlaneseq
        %v335 = vshrl.u32 %v334, 7
        %v336 = vsub.s32 0, %v335
        %v337 = vrot.slane %v332, %v336
        %v338 = vadd.f32 %v327, %v337
        %v339 = vsub.f32 0.0, %v338
        %v340 = vmul.f32 %v339, 1.442695
        %v341 = vpow.pop %v340
        %v342 = vadd.f32 %v341, 1.0
        %v343 = vrcp.pop %v342
        %v344 = vld [vmem:[%s233] sm:$0xf]
        %v345 = vmul.f32 %v344, %v343
        %346 = vst [vmem:[%s259] sm:$0xf] %v345
        %s347 = sand.u32 %s158, 1
        %s348 = scalar_lea.sflag [#allocation5], %s347
        %s349 = sand.u32 %s158, 1
        %s350 = smul.addr %s349, 4
        %s351 = scalar_lea.vmem [#allocation6], %s350
        // Predicated region
        $region45: #{tpu_custom_call.1} parent=39 // pred_check
          %p352 = pneg %p168
        $region46: #{tpu_custom_call.1} parent=39 // pred_check_branch
          %354 = sbr.rel (%p352) target = $region48
        $region47: #{tpu_custom_call.1} parent=39 // pred_region
          %s356 = ssub.s32 64, 64
          %357 = vsyncadd %s348, %s356
          %s358 = smul.addr %s28, 2
          %s359 = sadd.s32 %s29, %s358
          %s360 = smul.addr %s359, 64
          %s361 = scalar_lea.hbm %s5, %s360
          %s363 = sshll.u32 %s351, 4
          %s364 = int_to_ptr.vmem [resolvable:$true] %s363
          %366 = dma.vmem_to_hbm [thread:$0]  %s364, 64, %s361, %s348
        $region48: #{tpu_custom_call.1} parent=39 // pred_fallthru
          _
      $region40: #{tpu_custom_call.1} parent=5 // pred_fallthru
        _
      %p367 = scmp.le.s32.totalorder 2, %s19
      // Predicated region
      $region49: #{tpu_custom_call.1} parent=5 // pred_check
        %p368 = pneg %p367
      $region50: #{tpu_custom_call.1} parent=5 // pred_check_branch
        %370 = sbr.rel (%p368) target = $region52
      $region51: #{tpu_custom_call.1} parent=5 // pred_region
        %s371 = ssub.s32 %s19, 2
        // Predicated region
        $region53: #{tpu_custom_call.1} parent=51 // pred_check
          %p372 = pneg %p174
        $region54: #{tpu_custom_call.1} parent=51 // pred_check_branch
          %374 = sbr.rel (%p372) target = $region56
        $region55: #{tpu_custom_call.1} parent=51 // pred_region
          %s375 = sand.u32 %s159, 1
          %s376 = scalar_lea.sflag [#allocation5], %s375
          %s377 = sand.u32 %s159, 1
          %s378 = smul.addr %s377, 4
          %s379 = scalar_lea.vmem [#allocation6], %s378
          %380 = dma.done %s376, 64
        $region56: #{tpu_custom_call.1} parent=51 // pred_fallthru
          _
      $region52: #{tpu_custom_call.1} parent=5 // pred_fallthru
        _
    $region6: #{tpu_custom_call.1} parent=1 // loop_footer
      %s23 = sadd.s32 1, %s19
    $region7: #{tpu_custom_call.1} parent=1 // loop_footer_branch
      %18 = sbr.rel target = $region3
    $region8: #{tpu_custom_call.1} parent=1 // loop_exit
      _
    %381 = vsyncpa [#allocation4], 1
    %s382 = scalar_lea.sflag [#allocation4], 1
    %383 = vsyncpa %s382, 1
    %384 = vsyncpa [#allocation5], 1
    %s385 = scalar_lea.sflag [#allocation5], 1
    %386 = vsyncpa %s385, 1

</llo_original>
